<compile_context>
chip_gen: v7x
topology: tpu7x:2x2x1
jax: 0.10.0
libtpu: 0.0.40
codegen_flags: <defaults>
</compile_context>

<pallas_src>
import functools

import jax
import jax.numpy as jnp
from jax.experimental import pallas as pl
from jax.experimental.pallas import tpu as pltpu


def _focal_loss_kernel(x_ref, t_ref, out_ref, acc_ref, *, gamma, n_rows):
    # x_ref: (TILE_N, C) logits (any float dtype), t_ref: (TILE_N, 1) int32,
    # out_ref: (1, 1) f32 final loss, acc_ref: (1, 1) f32 running sum of NLL.
    i = pl.program_id(0)
    last = pl.num_programs(0) - 1

    @pl.when(i == 0)
    def _init():
        acc_ref[...] = jnp.zeros_like(acc_ref)

    x = x_ref[...].astype(jnp.float32)                     # per-tile f32 upcast
    tn, c = x.shape

    # validity mask for the (possibly ragged) last tile
    row = jax.lax.broadcasted_iota(jnp.int32, (tn, 1), 0) + i * tn
    valid = row < n_rows                                   # (TILE_N, 1) bool

    # invalid rows get target -1 so they never match any class lane
    t = jnp.where(valid, t_ref[...], -1)                   # (TILE_N, 1) int32

    # numerically stable log-sum-exp over classes (lane axis)
    m = jnp.max(x, axis=-1, keepdims=True)                 # (TILE_N, 1)
    lse = m + jnp.log(jnp.sum(jnp.exp(x - m), axis=-1, keepdims=True))

    # one-hot select of the target logit (no dynamic lane gather on TPU)
    cls = jax.lax.broadcasted_iota(jnp.int32, (tn, c), 1)
    onehot = cls == t                                      # (TILE_N, C) bool

    # fused tile-level reduction: sum of per-row NLL = sum(lse) - sum(tgt logit)
    partial = (jnp.sum(jnp.where(valid, lse, 0.0))
               - jnp.sum(jnp.where(onehot, x, 0.0)))
    acc_ref[...] = acc_ref[...] + partial

    @pl.when(i == last)
    def _finalize():
        logp = acc_ref[...] / jnp.float32(n_rows)          # batch-mean CE, (1, 1)
        p = jnp.exp(-logp)
        if gamma == 0.0:
            loss = logp
        else:
            # clamp avoids NaN from a tiny negative (1 - p) when p ~ 1
            loss = jnp.maximum(1.0 - p, 0.0) ** gamma * logp
        out_ref[...] = loss


def focal_loss(logits, targets, gamma=0.0, eps=1e-07, tile_n=1024):
    # eps is unused in the PyTorch forward pass; kept for signature parity.
    del eps
    n, c = logits.shape
    t2 = targets.reshape(n, 1).astype(jnp.int32)

    # Tile choice: full batch when small (full-dim block is always legal),
    # otherwise a sublane-aligned (multiple of 8) row tile.
    if tile_n >= n:
        tile_n = n
    else:
        tile_n = max(8, (int(tile_n) // 8) * 8)
    num_tiles = pl.cdiv(n, tile_n)

    itemsize = jnp.dtype(logits.dtype).itemsize
    tile_bytes = tile_n * c * itemsize + tile_n * 4        # one logits + one target tile
    cost = pl.CostEstimate(
        flops=int(5 * n * c),
        transcendentals=int(n * c),
        bytes_accessed=int(n * c * itemsize + n * 4 + 4),
    )

    out = pl.pallas_call(
        functools.partial(_focal_loss_kernel, gamma=float(gamma), n_rows=n),
        out_shape=jax.ShapeDtypeStruct((1, 1), jnp.float32),
        grid=(num_tiles,),
        in_specs=[
            pl.BlockSpec((tile_n, c), lambda i: (i, 0)),   # logits tile (pipelined)
            pl.BlockSpec((tile_n, 1), lambda i: (i, 0)),   # target indices tile
        ],
        out_specs=pl.BlockSpec((1, 1), lambda i: (0, 0)),  # resident scalar result
        scratch_shapes=[pltpu.VMEM((1, 1), jnp.float32)],  # running NLL sum
        compiler_params=pltpu.CompilerParams(
            dimension_semantics=("arbitrary",),            # reduction carried across grid
            vmem_limit_bytes=int(min(4 * tile_bytes + (8 << 20), 96 << 20)),
        ),
        cost_estimate=cost,
    )(logits, t2)
    return out[0, 0]


def _focal_loss_ref(logits, targets, gamma=0.0):
    # pure-JAX reference mirroring torch.nn.CrossEntropyLoss + focal modulation
    x = logits.astype(jnp.float32)
    logz = jax.nn.logsumexp(x, axis=-1)
    tgt = jnp.take_along_axis(x, targets[:, None].astype(jnp.int32), axis=-1)[:, 0]
    logp = jnp.mean(logz - tgt)
    p = jnp.exp(-logp)
    return jnp.maximum(1.0 - p, 0.0) ** gamma * logp


if __name__ == "__main__":
    key = jax.random.PRNGKey(0)
    k1, k2, k3, k4 = jax.random.split(key, 4)

    # Test 1: f32 logits, ragged batch -> exercises multi-tile grid + edge mask.
    N1, C1, G1 = 20, 128, 2.0
    logits1 = jax.random.normal(k1, (N1, C1), dtype=jnp.float32)
    targets1 = jax.random.randint(k2, (N1,), 0, C1, dtype=jnp.int32)
    got1 = focal_loss(logits1, targets1, gamma=G1, tile_n=8)
    jax.block_until_ready(got1)
    ref1 = _focal_loss_ref(logits1, targets1, gamma=G1)
    assert jnp.allclose(got1, ref1, rtol=1e-5, atol=1e-5), (got1, ref1)

    # Test 2: bf16 logits streamed directly (no wrapper-side f32 copy).
    N2, C2, G2 = 16, 128, 2.0
    logits2 = jax.random.normal(k3, (N2, C2), dtype=jnp.bfloat16)
    targets2 = jax.random.randint(k4, (N2,), 0, C2, dtype=jnp.int32)
    got2 = focal_loss(logits2, targets2, gamma=G2, tile_n=8)
    jax.block_until_ready(got2)
    ref2 = _focal_loss_ref(logits2, targets2, gamma=G2)
    assert jnp.allclose(got2, ref2, rtol=1e-4, atol=1e-4), (got2, ref2)

    # Test 3: gamma = 0 reduces to plain mean cross-entropy.
    got3 = focal_loss(logits1, targets1, gamma=0.0, tile_n=8)
    jax.block_until_ready(got3)
    ref3 = _focal_loss_ref(logits1, targets1, gamma=0.0)
    assert jnp.allclose(got3, ref3, rtol=1e-5, atol=1e-5), (got3, ref3)

    print("KERNEL_OK")
</pallas_src>

<mosaic_0001>
module attributes {stable_mosaic.version = 11 : i64} {
  func.func @_focal_loss_kernel(%arg0: i32, %arg1: memref<8x128xf32, #tpu.memory_space<vmem>>, %arg2: memref<8x1xi32, #tpu.memory_space<vmem>>, %arg3: memref<1x1xf32, #tpu.memory_space<vmem>>, %arg4: memref<1x1xf32, #tpu.memory_space<vmem>>) attributes {dimension_semantics = [#tpu.dimension_semantics<arbitrary>], iteration_bounds = array<i64: 3>, scalar_prefetch = 0 : i64, scratch_operands = 1 : i64, tpu.core_type = #tpu.core_type<tc>, window_params = [{transform_indices = @transform_0, window_bounds = array<i64: 8, 128>}, {transform_indices = @transform_1, window_bounds = array<i64: 8, 1>}, {pipeline_mode = #tpu.pipeline_mode<synchronous>, transform_indices = @transform_2, window_bounds = array<i64: 1, 1>}]} {
    %c0_i32 = arith.constant 0 : i32
    %0 = arith.cmpi eq, %arg0, %c0_i32 : i32
    %1 = arith.extui %0 : i1 to i32
    %c0_i32_0 = arith.constant 0 : i32
    %2 = arith.cmpi ne, %1, %c0_i32_0 : i32
    scf.if %2 {
      %cst_14 = arith.constant 0.000000e+00 : f32
      %45 = vector.broadcast %cst_14 : f32 to vector<1x1xf32>
      %c0_15 = arith.constant 0 : index
      %c0_16 = arith.constant 0 : index
      %46 = vector.load %arg4[%c0_15, %c0_16] : memref<1x1xf32, #tpu.memory_space<vmem>>, vector<1x1xf32>
      tpu.vector_store %arg4[%c0_15, %c0_16], %45 {strides = array<i32>} : memref<1x1xf32, #tpu.memory_space<vmem>>, vector<1x1xf32>,
    } else {
    }
    %c0 = arith.constant 0 : index
    %c0_1 = arith.constant 0 : index
    %3 = vector.load %arg1[%c0, %c0_1] : memref<8x128xf32, #tpu.memory_space<vmem>>, vector<8x128xf32>
    %4 = tpu.iota {dimensions = array<i32: 0>} : vector<8x1xi32>
    %c8_i32 = arith.constant 8 : i32
    %5 = arith.muli %arg0, %c8_i32 : i32
    %6 = vector.broadcast %5 : i32 to vector<8x1xi32>
    %7 = arith.addi %4, %6 : vector<8x1xi32>
    %c20_i32 = arith.constant 20 : i32
    %8 = vector.broadcast %c20_i32 : i32 to vector<8x1xi32>
    %9 = arith.cmpi slt, %7, %8 : vector<8x1xi32>
    %c0_2 = arith.constant 0 : index
    %c0_3 = arith.constant 0 : index
    %10 = vector.load %arg2[%c0_2, %c0_3] : memref<8x1xi32, #tpu.memory_space<vmem>>, vector<8x1xi32>
    %c-1_i32 = arith.constant -1 : i32
    %11 = vector.broadcast %c-1_i32 : i32 to vector<8x1xi32>
    %12 = arith.select %9, %10, %11 : vector<8x1xi1>, vector<8x1xi32>
    %cst = arith.constant dense<0xFF800000> : vector<8xf32>
    %13 = vector.multi_reduction <maximumf>, %3, %cst [1] : vector<8x128xf32> to vector<8xf32>
    %14 = vector.shape_cast %13 : vector<8xf32> to vector<8x1xf32>
    %15 = vector.broadcast %14 : vector<8x1xf32> to vector<8x128xf32>
    %16 = arith.subf %3, %15 : vector<8x128xf32>
    %17 = math.exp %16 : vector<8x128xf32>
    %cst_4 = arith.constant dense<0.000000e+00> : vector<8xf32>
    %18 = vector.multi_reduction <add>, %17, %cst_4 [1] : vector<8x128xf32> to vector<8xf32>
    %19 = vector.shape_cast %18 : vector<8xf32> to vector<8x1xf32>
    %20 = math.log %19 : vector<8x1xf32>
    %21 = arith.addf %14, %20 : vector<8x1xf32>
    %22 = tpu.iota {dimensions = array<i32: 1>} : vector<8x128xi32>
    %23 = vector.broadcast %12 : vector<8x1xi32> to vector<8x128xi32>
    %24 = arith.cmpi eq, %22, %23 : vector<8x128xi32>
    %cst_5 = arith.constant 0.000000e+00 : f32
    %25 = vector.broadcast %cst_5 : f32 to vector<8x1xf32>
    %26 = arith.select %9, %21, %25 : vector<8x1xi1>, vector<8x1xf32>
    %27 = vector.shape_cast %26 : vector<8x1xf32> to vector<1x8x1xf32>
    %cst_6 = arith.constant dense<0.000000e+00> : vector<1xf32>
    %28 = vector.multi_reduction <add>, %27, %cst_6 [1, 2] : vector<1x8x1xf32> to vector<1xf32>
    %29 = vector.shape_cast %28 : vector<1xf32> to vector<1x1x1xf32>
    %30 = vector.extract %29[0, 0, 0] : f32 from vector<1x1x1xf32>
    %cst_7 = arith.constant 0.000000e+00 : f32
    %31 = vector.broadcast %cst_7 : f32 to vector<8x128xf32>
    %32 = arith.select %24, %3, %31 : vector<8x128xi1>, vector<8x128xf32>
    %33 = vector.shape_cast %32 : vector<8x128xf32> to vector<1x8x128xf32>
    %cst_8 = arith.constant dense<0.000000e+00> : vector<1xf32>
    %34 = vector.multi_reduction <add>, %33, %cst_8 [1, 2] : vector<1x8x128xf32> to vector<1xf32>
    %35 = vector.shape_cast %34 : vector<1xf32> to vector<1x1x1xf32>
    %36 = vector.extract %35[0, 0, 0] : f32 from vector<1x1x1xf32>
    %37 = arith.subf %30, %36 : f32
    %c0_9 = arith.constant 0 : index
    %c0_10 = arith.constant 0 : index
    %38 = vector.load %arg4[%c0_9, %c0_10] : memref<1x1xf32, #tpu.memory_space<vmem>>, vector<1x1xf32>
    %39 = vector.broadcast %37 : f32 to vector<1x1xf32>
    %40 = arith.addf %38, %39 : vector<1x1xf32>
    %c0_11 = arith.constant 0 : index
    %c0_12 = arith.constant 0 : index
    %41 = vector.load %arg4[%c0_11, %c0_12] : memref<1x1xf32, #tpu.memory_space<vmem>>, vector<1x1xf32>
    tpu.vector_store %arg4[%c0_11, %c0_12], %40 {strides = array<i32>} : memref<1x1xf32, #tpu.memory_space<vmem>>, vector<1x1xf32>,
    %c2_i32 = arith.constant 2 : i32
    %42 = arith.cmpi eq, %arg0, %c2_i32 : i32
    %43 = arith.extui %42 : i1 to i32
    %c0_i32_13 = arith.constant 0 : i32
    %44 = arith.cmpi ne, %43, %c0_i32_13 : i32
    scf.if %44 {
      %c0_14 = arith.constant 0 : index
      %c0_15 = arith.constant 0 : index
      %45 = vector.load %arg4[%c0_14, %c0_15] : memref<1x1xf32, #tpu.memory_space<vmem>>, vector<1x1xf32>
      %cst_16 = arith.constant 2.000000e+01 : f32
      %46 = vector.broadcast %cst_16 : f32 to vector<1x1xf32>
      %47 = arith.divf %45, %46 : vector<1x1xf32>
      %cst_17 = arith.constant 0.000000e+00 : f32
      %48 = vector.broadcast %cst_17 : f32 to vector<1x1xf32>
      %49 = arith.subf %48, %47 : vector<1x1xf32>
      %50 = math.exp %49 : vector<1x1xf32>
      %cst_18 = arith.constant 1.000000e+00 : f32
      %51 = vector.broadcast %cst_18 : f32 to vector<1x1xf32>
      %52 = arith.subf %51, %50 : vector<1x1xf32>
      %cst_19 = arith.constant 0.000000e+00 : f32
      %53 = vector.broadcast %cst_19 : f32 to vector<1x1xf32>
      %54 = arith.maximumf %52, %53 : vector<1x1xf32>
      %cst_20 = arith.constant 2.000000e+00 : f32
      %55 = vector.broadcast %cst_20 : f32 to vector<1x1xf32>
      %56 = math.powf %54, %55 : vector<1x1xf32>
      %57 = arith.mulf %56, %47 : vector<1x1xf32>
      %c0_21 = arith.constant 0 : index
      %c0_22 = arith.constant 0 : index
      %58 = vector.load %arg3[%c0_21, %c0_22] : memref<1x1xf32, #tpu.memory_space<vmem>>, vector<1x1xf32>
      tpu.vector_store %arg3[%c0_21, %c0_22], %57 {strides = array<i32>} : memref<1x1xf32, #tpu.memory_space<vmem>>, vector<1x1xf32>,
    } else {
    }
    return
  }
  func.func @transform_0(%arg0: i32) -> (i32, i32) {
    %c0_i32 = arith.constant 0 : i32
    %c0_i32_0 = arith.constant 0 : i32
    return %arg0, %c0_i32 : i32, i32
  }
  func.func @transform_1(%arg0: i32) -> (i32, i32) {
    %c0_i32 = arith.constant 0 : i32
    %c0_i32_0 = arith.constant 0 : i32
    return %arg0, %c0_i32 : i32, i32
  }
  func.func @transform_2(%arg0: i32) -> (i32, i32) {
    %c0_i32 = arith.constant 0 : i32
    %c0_i32_0 = arith.constant 0 : i32
    %c0_i32_1 = arith.constant 0 : i32
    return %c0_i32, %c0_i32_0 : i32, i32
  }
}

</mosaic_0001>

<llo_original>
// kernel: tpu_custom_call.1
$region0: #{tpu_custom_call.1}
  #allocation0 [shape = 'u32[]', space=smem, size = 0x4, offset = 0x4, fixed_abs, tag = 'smem constant byte address 0x4 - core index']
  #allocation1 [shape = 'u32[144,128]{1,0:T(1,128)}', space=vmem, size = 0x12000, scoped, tag = 'internal scratch']
  #allocation2 [shape = 'f32[1,1]{1,0:T(1,128)}', space=vmem, size = 0x200, scoped, tag = 'scratch operand']
  %s0 = inlined_call_operand.vmem [shape: f32[20,128], index: 0, kind: input, shape index: {}]
  %s1 = inlined_call_operand.vmem [shape: s32[20,1], index: 1, kind: input, shape index: {}]
  %s2 = inlined_call_operand.hbm [shape: f32[1,1], index: 2, kind: output, shape index: {}]
  %s3 = sld [smem:[#allocation0]]
  $region49: #{tpu_custom_call.1} parent=0
    _
  %s5 = ssub.s32 1, %s3
  %s6 = scalar_select 0, %s5, %s3
  $region1: #{tpu_custom_call.1} parent=0
    #allocation3 [shape = 'u8[512]{0}', space=vmem, size = 0x400, scoped, tag = 'output window, operand 0, single buffered']
    #allocation4 [shape = 's32[2]{0}', space=sflag, size = 0x8, scoped, tag = 'scoped memory for tpu_custom_call.1']
    %7 = vsyncpa [#allocation4], 0
    loop: start=0, step=1, limit=5
    $region2: #{tpu_custom_call.1} parent=1 // loop_pre_header
      _
    $region3: #{tpu_custom_call.1} parent=1 // loop_header
      %s9 = sphi 0, %s13
      %p10 = scmp.ge.s32.totalorder %s9, 5
      %s19 = sphi 0, %s21
      %s22 = sphi 0, %s19
      %s23 = sphi 0, %s22
      %s39 = sphi 0, %s23
      %s45 = sphi 0, %s47
      %s48 = sphi 0, %s45
      %s49 = sphi 0, %s48
      %s65 = sphi 0, %s49
      %s69 = sphi 0, %s69
      %s71 = sphi 0, %s69
      %s72 = sphi 0, %s71
      %s86 = sphi 0, %s72
    $region4: #{tpu_custom_call.1} parent=1 // loop_header_branch
      %12 = sbr.rel (%p10) target = $region8
    $region5: #{tpu_custom_call.1} parent=1 // loop_body
      %s14 = ssub.s32 %s9, 1
      %s15 = ssub.s32 %s9, 2
      %s16 = sadd.s32 %s9, 1
      %s17 = ssub.s32 %s9, %s16
      %p18 = scmp.eq.s32.totalorder %s17, 0
      %s20 = sadd.s32 %s19, 1
      %s21 = scalar_select %p18, %s19, %s20
      %p24 = pneg %p18
      %p25 = scmp.eq.s32.totalorder %s9, 2
      %p26 = por %p24, %p25
      %p27 = scmp.ne.s32.totalorder %s19, %s22
      %p28 = scmp.eq.s32.totalorder %s9, 0
      %p29 = por %p27, %p28
      %p30 = scmp.ne.s32.totalorder %s19, %s22
      %p31 = scmp.eq.s32.totalorder %s14, 2
      %p32 = por %p30, %p31
      %p33 = scmp.ne.s32.totalorder %s22, %s23
      %p34 = scmp.eq.s32.totalorder %s14, 0
      %p35 = por %p33, %p34
      %p36 = scmp.ne.s32.totalorder %s22, %s23
      %p37 = scmp.eq.s32.totalorder %s15, 2
      %p38 = por %p36, %p37
      %p40 = scmp.ne.s32.totalorder %s23, %s39
      %p41 = scmp.eq.s32.totalorder %s15, 0
      %p42 = por %p40, %p41
      %s43 = ssub.s32 %s9, %s16
      %p44 = scmp.eq.s32.totalorder %s43, 0
      %s46 = sadd.s32 %s45, 1
      %s47 = scalar_select %p44, %s45, %s46
      %p50 = pneg %p44
      %p51 = scmp.eq.s32.totalorder %s9, 2
      %p52 = por %p50, %p51
      %p53 = scmp.ne.s32.totalorder %s45, %s48
      %p54 = scmp.eq.s32.totalorder %s9, 0
      %p55 = por %p53, %p54
      %p56 = scmp.ne.s32.totalorder %s45, %s48
      %p57 = scmp.eq.s32.totalorder %s14, 2
      %p58 = por %p56, %p57
      %p59 = scmp.ne.s32.totalorder %s48, %s49
      %p60 = scmp.eq.s32.totalorder %s14, 0
      %p61 = por %p59, %p60
      %p62 = scmp.ne.s32.totalorder %s48, %s49
      %p63 = scmp.eq.s32.totalorder %s15, 2
      %p64 = por %p62, %p63
      %p66 = scmp.ne.s32.totalorder %s49, %s65
      %p67 = scmp.eq.s32.totalorder %s15, 0
      %p68 = por %p66, %p67
      %s70 = sadd.s32 %s69, 1
      %p73 = scmp.eq.s32.totalorder %s9, 2
      %p74 = scmp.ne.s32.totalorder %s69, %s71
      %p75 = scmp.eq.s32.totalorder %s9, 0
      %p76 = por %p74, %p75
      %p77 = scmp.ne.s32.totalorder %s69, %s71
      %p78 = scmp.eq.s32.totalorder %s14, 2
      %p79 = por %p77, %p78
      %p80 = scmp.ne.s32.totalorder %s71, %s72
      %p81 = scmp.eq.s32.totalorder %s14, 0
      %p82 = por %p80, %p81
      %p83 = scmp.ne.s32.totalorder %s71, %s72
      %p84 = scmp.eq.s32.totalorder %s15, 2
      %p85 = por %p83, %p84
      %p87 = scmp.ne.s32.totalorder %s72, %s86
      %p88 = scmp.eq.s32.totalorder %s15, 0
      %p89 = por %p87, %p88
      %p90 = scmp.le.s32.totalorder 1, %s9
      %p91 = scmp.lt.s32.totalorder %s9, 4
      %p92 = pnand %p90, %p91
      %p93 = pneg %p92
      // Predicated region
      $region9: #{tpu_custom_call.1} parent=5 // pred_check
        _
      $region10: #{tpu_custom_call.1} parent=5 // pred_check_branch
        %95 = sbr.rel (%p92) target = $region12
      $region11: #{tpu_custom_call.1} parent=5 // pred_region
        %s96 = ssub.s32 %s9, 1
      $region12: #{tpu_custom_call.1} parent=5 // pred_fallthru
        _
      %p97 = scmp.lt.s32.totalorder %s9, 3
      // Predicated region
      $region13: #{tpu_custom_call.1} parent=5 // pred_check
        %p98 = pneg %p97
      $region14: #{tpu_custom_call.1} parent=5 // pred_check_branch
        %100 = sbr.rel (%p98) target = $region16
      $region15: #{tpu_custom_call.1} parent=5 // pred_region
        // Predicated region
        $region17: #{tpu_custom_call.1} parent=15 // pred_check
          %p101 = pneg %p29
        $region18: #{tpu_custom_call.1} parent=15 // pred_check_branch
          %103 = sbr.rel (%p101) target = $region20
        $region19: #{tpu_custom_call.1} parent=15 // pred_region
          %p104 = scmp.lt.s32.totalorder %s9, 2
          %s105 = scalar_select %p104, %s9, 2
          %s106 = smul.addr %s105, 8
          %s107 = scalar_lea.vmem %s0, %s106
        $region20: #{tpu_custom_call.1} parent=15 // pred_fallthru
          _
        // Predicated region
        $region21: #{tpu_custom_call.1} parent=15 // pred_check
          %p108 = pneg %p55
        $region22: #{tpu_custom_call.1} parent=15 // pred_check_branch
          %110 = sbr.rel (%p108) target = $region24
        $region23: #{tpu_custom_call.1} parent=15 // pred_region
          %p111 = scmp.lt.s32.totalorder %s9, 2
          %s112 = scalar_select %p111, %s9, 2
          %s113 = smul.addr %s112, 8
          %s114 = scalar_lea.vmem %s1, %s113
        $region24: #{tpu_custom_call.1} parent=15 // pred_fallthru
          _
      $region16: #{tpu_custom_call.1} parent=5 // pred_fallthru
        _
      %p115 = scmp.le.s32.totalorder 1, %s9
      %p116 = scmp.lt.s32.totalorder %s9, 4
      %p117 = pnand %p115, %p116
      %p118 = pneg %p117
      // Predicated region
      $region25: #{tpu_custom_call.1} parent=5 // pred_check
        _
      $region26: #{tpu_custom_call.1} parent=5 // pred_check_branch
        %120 = sbr.rel (%p117) target = $region28
      $region27: #{tpu_custom_call.1} parent=5 // pred_region
        %s121 = ssub.s32 %s9, 1
        %p122 = scmp.lt.s32.totalorder %s14, 2
        %s123 = scalar_select %p122, %s14, 2
        %s124 = smul.addr %s123, 8
        %s125 = scalar_lea.vmem %s0, %s124
        %p126 = pneg %p35
        %p127 = pneg %p32
        %p128 = scmp.lt.s32.totalorder %s14, 2
        %s129 = scalar_select %p128, %s14, 2
        %s130 = smul.addr %s129, 8
        %s131 = scalar_lea.vmem %s1, %s130
        %p132 = pneg %p61
        %p133 = pneg %p58
        %p134 = pneg %p82
        %p135 = pneg %p79
        %p136 = scmp.lt.s32.totalorder %s14, 2
        %s137 = scalar_select %p136, %s14, 2
        %s138 = smul.addr %s137, 8
        %s139 = scalar_lea.vmem %s0, %s138
        %p140 = scmp.lt.s32.totalorder %s14, 2
        %s141 = scalar_select %p140, %s14, 2
        %s142 = smul.addr %s141, 8
        %s143 = scalar_lea.vmem %s1, %s142
        %p144 = scmp.eq.s32.totalorder %s14, 0
        // Predicated region
        $region29: #{tpu_custom_call.1} parent=27 // pred_check
          %p145 = pneg %p144
        $region30: #{tpu_custom_call.1} parent=27 // pred_check_branch
          %147 = sbr.rel (%p145) target = $region32
        $region31: #{tpu_custom_call.1} parent=27 // pred_region
          %vm148 = vcmask 0
          %149 = vst.msk [vmem:[#allocation2] sm:$0x1] %vm148, 0.0
        $region32: #{tpu_custom_call.1} parent=27 // pred_fallthru
          _
        %v150 = vld [vmem:[%s139] sm:$0xff]
        %v151 = vlaneseq
        %v152 = vshrl.u32 %v151, 7
        %s153 = smul.u32 %s14, 8
        %v154 = vstv %s153
        %v155 = vadd.s32 %v152, %v154
        %vm156 = vcmp.lt.s32.totalorder %v155, 20
        %v157 = vld [vmem:[%s143] sm:$0xff]
        %v158 = vsel %vm156, %v157, 4294967295
        %159 = vmax.xlane.f32.xlu0 %v150
        %v160 = vpop.xlane.xlu0 %159
        %v161 = vsub.f32 %v150, %v160
        %v162 = vmul.f32 %v161, 1.442695
        %v163 = vpow.pop %v162
        %164 = vadd.xlane.f32.xlu0 %v163
        %v165 = vpop.xlane.xlu0 %164
        %v166 = vlog2.pop %v165
        %v167 = vmul.f32 %v166, 0.6931472
        %v168 = vadd.f32 %v160, %v167
        %v169 = vlaneseq
        %v170 = vand.u32 %v169, 127
        %171 = vset.pattern.permute.xlu0 0
        %172 = vperm.xlu0 %171, %v158
        %v173 = vpop.permute.xlu0 %172
        %vm174 = vcmp.eq.s32.totalorder %v170, %v173
        %v175 = vsel %vm156, %v168, 0.0
        %vm176 = vcmask 7168
        %v177 = vsel %vm176, %v175, 0.0
        %178 = vadd.xlane.f32.xlu0 %v177
        %v179 = vpop.xlane.xlu0 %178
        %v180 = vrot.slane %v179, 4
        %v181 = vadd.f32 %v179, %v180
        %v182 = vrot.slane %v181, 2
        %v183 = vadd.f32 %v181, %v182
        %v184 = vrot.slane %v183, 1
        %v185 = vadd.f32 %v183, %v184
        %s186 = vtos %v185
        %v187 = vsel %vm174, %v150, 0.0
        %188 = vadd.xlane.f32.xlu0 %v187
        %v189 = vpop.xlane.xlu0 %188
        %v190 = vrot.slane %v189, 4
        %v191 = vadd.f32 %v189, %v190
        %v192 = vrot.slane %v191, 2
        %v193 = vadd.f32 %v191, %v192
        %v194 = vrot.slane %v193, 1
        %v195 = vadd.f32 %v193, %v194
        %s196 = vtos %v195
        %s197 = ssub.f32 %s186, %s196
        %v198 = vld [vmem:[#allocation2] sm:$0x1]
        %v199 = vstv %s197
        %v200 = vadd.f32 %v198, %v199
        %vm201 = vcmask 0
        %202 = vst.msk [vmem:[#allocation2] sm:$0x1] %vm201, %v200
        %p203 = scmp.eq.s32.totalorder %s14, 2
        // Predicated region
        $region33: #{tpu_custom_call.1} parent=27 // pred_check
          %p204 = pneg %p203
        $region34: #{tpu_custom_call.1} parent=27 // pred_check_branch
          %206 = sbr.rel (%p204) target = $region36
        $region35: #{tpu_custom_call.1} parent=27 // pred_region
          %v207 = vld [vmem:[#allocation2] sm:$0x1]
          %v208 = vrcp.pop 20.0
          %v209 = vmul.f32 %v207, %v208
          %v210 = vsub.f32 0.0, %v209
          %v211 = vmul.f32 %v210, 1.442695
          %v212 = vpow.pop %v211
          %v213 = vsub.f32 1.0, %v212
          %v214 = vmax.f32 %v213, 0.0
          %v215 = vpow.f32 %v214, 2.0
          %v216 = vmul.f32 %v215, %v209
          %217 = vst.msk [vmem:[#allocation3] sm:$0x1] %vm201, %v216
        $region36: #{tpu_custom_call.1} parent=27 // pred_fallthru
          _
        // Predicated region
        $region37: #{tpu_custom_call.1} parent=27 // pred_check
          %p218 = pneg %p79
        $region38: #{tpu_custom_call.1} parent=27 // pred_check_branch
          %220 = sbr.rel (%p218) target = $region40
        $region39: #{tpu_custom_call.1} parent=27 // pred_region
          %s222 = ssub.s32 16, 16
          %223 = vsyncadd [#allocation4], %s222
          %s225 = sshll.u32 [#allocation3], 4
          %s226 = int_to_ptr.vmem [resolvable:$true] %s225
          %228 = dma.vmem_to_hbm [thread:$0]  %s226, 16, %s2, [#allocation4]
        $region40: #{tpu_custom_call.1} parent=27 // pred_fallthru
          _
        // Predicated region
        $region41: #{tpu_custom_call.1} parent=27 // pred_check
          %p229 = pneg %p79
        $region42: #{tpu_custom_call.1} parent=27 // pred_check_branch
          %231 = sbr.rel (%p229) target = $region44
        $region43: #{tpu_custom_call.1} parent=27 // pred_region
          %232 = dma.done [#allocation4], 16
        $region44: #{tpu_custom_call.1} parent=27 // pred_fallthru
          _
      $region28: #{tpu_custom_call.1} parent=5 // pred_fallthru
        _
      %p233 = scmp.le.s32.totalorder 2, %s9
      // Predicated region
      $region45: #{tpu_custom_call.1} parent=5 // pred_check
        %p234 = pneg %p233
      $region46: #{tpu_custom_call.1} parent=5 // pred_check_branch
        %236 = sbr.rel (%p234) target = $region48
      $region47: #{tpu_custom_call.1} parent=5 // pred_region
        %s237 = ssub.s32 %s9, 2
      $region48: #{tpu_custom_call.1} parent=5 // pred_fallthru
        _
    $region6: #{tpu_custom_call.1} parent=1 // loop_footer
      %s13 = sadd.s32 1, %s9
    $region7: #{tpu_custom_call.1} parent=1 // loop_footer_branch
      %8 = sbr.rel target = $region3
    $region8: #{tpu_custom_call.1} parent=1 // loop_exit
      _
    %238 = vsyncpa [#allocation4], 1
    %s239 = scalar_lea.sflag [#allocation4], 1
    %240 = vsyncpa %s239, 1

</llo_original>
